<compile_context>
chip_gen: v5e
topology: v5e:2x2
jax: 0.10.0
libtpu: 0.0.40
codegen_flags: <defaults>
</compile_context>

<pallas_src>
import functools

import jax
import jax.numpy as jnp
from jax.experimental import pallas as pl
from jax.experimental.pallas import tpu as pltpu


LANE = 128          # hidden/action dims padded to the lane width
BATCH_ALIGN = 16    # bf16 LHS packs 16 rows per sublane group
MAX_TILE_B = 2048   # ~3.6 KB/row double-buffered -> far below any VMEM limit


def _round_up(x, m):
    return ((x + m - 1) // m) * m


def policy_kernel(x_ref, w1_ref, b1_ref, w2_ref, b2_ref, w3_ref, b3_ref, o_ref):
    # Layer 1: bf16 MXU operands, f32 accumulate, f32 bias + ReLU epilogue (VPU).
    x = x_ref[...].astype(jnp.bfloat16)
    h = jnp.dot(x, w1_ref[...], preferred_element_type=jnp.float32) + b1_ref[...]
    h = jnp.maximum(h, 0.0)
    # Layer 2
    h = jnp.dot(h.astype(jnp.bfloat16), w2_ref[...],
                preferred_element_type=jnp.float32) + b2_ref[...]
    h = jnp.maximum(h, 0.0)
    # Layer 3 + tanh (EUP); output block is lane-dense (padded action dim), bf16.
    h = jnp.dot(h.astype(jnp.bfloat16), w3_ref[...],
                preferred_element_type=jnp.float32) + b3_ref[...]
    o_ref[...] = jnp.tanh(h).astype(o_ref.dtype)


def prepare_params(params, lane=LANE):
    """One-time layout prep: transpose torch-layout weights to (in, out),
    zero-pad hidden/action dims to a multiple of 128, cast weights to bf16
    (MXU operands).  Biases stay f32 rows (VPU epilogue)."""
    w1, b1 = params["w1"], params["b1"]  # (H, I), (H,)
    w2, b2 = params["w2"], params["b2"]  # (H, H), (H,)
    w3, b3 = params["w3"], params["b3"]  # (A, H), (A,)
    H, I = w1.shape
    A = w3.shape[0]
    Hp, Ap = _round_up(H, lane), _round_up(A, lane)

    def pad_to(a, shape):
        out = jnp.zeros(shape, a.dtype)
        return out.at[tuple(slice(0, s) for s in a.shape)].set(a)

    return {
        "w1t": pad_to(w1.T, (I, Hp)).astype(jnp.bfloat16),
        "b1": pad_to(b1.reshape(1, H), (1, Hp)).astype(jnp.float32),
        "w2t": pad_to(w2.T, (Hp, Hp)).astype(jnp.bfloat16),
        "b2": pad_to(b2.reshape(1, H), (1, Hp)).astype(jnp.float32),
        "w3t": pad_to(w3.T, (Hp, Ap)).astype(jnp.bfloat16),
        "b3": pad_to(b3.reshape(1, A), (1, Ap)).astype(jnp.float32),
    }


def _choose_tiling(batch):
    """Remainder-aware batch tiling.

    Choose the number of grid steps first (>=2 whenever the batch holds at
    least two 16-row tiles, so both v7x TensorCores get work and the state /
    output DMA double-buffers), then derive tile_b from it.  Padding is then
    bounded by BATCH_ALIGN-1 rows per tile instead of up to a full tile."""
    grid = pl.cdiv(batch, MAX_TILE_B)
    if batch >= 2 * BATCH_ALIGN:
        grid = max(grid, 2)
    tile_b = _round_up(pl.cdiv(batch, grid), BATCH_ALIGN)
    grid = pl.cdiv(batch, tile_b)
    return tile_b, grid, tile_b * grid


@functools.partial(jax.jit, static_argnames=("num_actions",))
def policy_forward(state, prep, *, num_actions):
    """state: (B, num_inputs) f32.  prep: output of prepare_params()."""
    B, I = state.shape
    Hp = prep["w2t"].shape[0]
    Ap = prep["w3t"].shape[1]

    tile_b, num_tiles, Bp = _choose_tiling(B)

    x = state.astype(jnp.float32)
    if Bp != B:
        # Cheap rectangular pad (remainder-aware tiling bounds it to <16 rows
        # per tile) instead of a scatter-style zeros().at[].set() copy.
        x = jnp.pad(x, ((0, Bp - B), (0, 0)))

    # Scoped-VMEM budget: double-buffered batch tiles (f32 in / bf16 out),
    # resident weights+biases (with a double-buffer allowance: ~70 KB at
    # Hp=128, i.e. noise), f32 activation headroom.  Capped at 32 MiB so it
    # leaves ample headroom inside v7x's 64 MiB physical VMEM.
    weight_bytes = (I * Hp + Hp * Hp + Hp * Ap) * 2 + (2 * Hp + Ap) * 4
    vmem = 2 * tile_b * I * 4 + 2 * tile_b * Ap * 2
    vmem += 2 * weight_bytes
    vmem += 6 * tile_b * Hp * 4
    vmem_limit = min(int(vmem * 1.5) + (4 << 20), 32 << 20)

    cost = pl.CostEstimate(
        flops=2 * Bp * (I * Hp + Hp * Hp + Hp * Ap),
        transcendentals=Bp * Ap,
        bytes_accessed=Bp * I * 4 + weight_bytes + Bp * Ap * 2,
    )

    out_padded = pl.pallas_call(
        policy_kernel,
        out_shape=jax.ShapeDtypeStruct((Bp, Ap), jnp.bfloat16),
        grid=(num_tiles,),
        in_specs=[
            pl.BlockSpec((tile_b, I), lambda i: (i, 0)),   # state: batch-tiled
            pl.BlockSpec((I, Hp), lambda i: (0, 0)),       # weights/biases:
            pl.BlockSpec((1, Hp), lambda i: (0, 0)),       #   constant index_map
            pl.BlockSpec((Hp, Hp), lambda i: (0, 0)),      #   -> VMEM-resident,
            pl.BlockSpec((1, Hp), lambda i: (0, 0)),       #   no re-DMA per step
            pl.BlockSpec((Hp, Ap), lambda i: (0, 0)),
            pl.BlockSpec((1, Ap), lambda i: (0, 0)),
        ],
        out_specs=pl.BlockSpec((tile_b, Ap), lambda i: (i, 0)),
        compiler_params=pltpu.CompilerParams(
            dimension_semantics=("parallel",),
            vmem_limit_bytes=vmem_limit,
        ),
        cost_estimate=cost,
    )(x, prep["w1t"], prep["b1"], prep["w2t"], prep["b2"], prep["w3t"], prep["b3"])

    # Tiny (B, A) slice of the lane-dense padded bf16 output; cast back to f32.
    return out_padded[:B, :num_actions].astype(jnp.float32)


def init_params(num_inputs, num_actions, hidden_size, init_w=0.003, seed=0):
    """Deterministic init mirroring the PyTorch module (torch layout)."""
    keys = jax.random.split(jax.random.PRNGKey(seed), 6)
    lim1 = 1.0 / jnp.sqrt(jnp.float32(num_inputs))
    lim2 = 1.0 / jnp.sqrt(jnp.float32(hidden_size))
    w1 = jax.random.uniform(keys[0], (hidden_size, num_inputs), jnp.float32, -lim1, lim1)
    b1 = jax.random.uniform(keys[1], (hidden_size,), jnp.float32, -lim1, lim1)
    w2 = jax.random.uniform(keys[2], (hidden_size, hidden_size), jnp.float32, -lim2, lim2)
    b2 = jax.random.uniform(keys[3], (hidden_size,), jnp.float32, -lim2, lim2)
    w3 = jax.random.uniform(keys[4], (num_actions, hidden_size), jnp.float32, -init_w, init_w)
    b3 = jax.random.uniform(keys[5], (num_actions,), jnp.float32, -init_w, init_w)
    return {"w1": w1, "b1": b1, "w2": w2, "b2": b2, "w3": w3, "b3": b3}


def reference_forward(state, p):
    h = jnp.maximum(state @ p["w1"].T + p["b1"], 0.0)
    h = jnp.maximum(h @ p["w2"].T + p["b2"], 0.0)
    return jnp.tanh(h @ p["w3"].T + p["b3"])


if __name__ == "__main__":
    batch, num_inputs, num_actions, hidden_size = 8, 16, 4, 32

    key = jax.random.PRNGKey(0)
    state = jax.random.normal(key, (batch, num_inputs), jnp.float32)
    params = init_params(num_inputs, num_actions, hidden_size, init_w=0.003, seed=0)

    prep = prepare_params(params)  # one-time transpose/pad/bf16 cast
    out = policy_forward(state, prep, num_actions=num_actions)
    out = jax.block_until_ready(out)

    ref = reference_forward(state, params)  # f32 reference
    assert out.shape == (batch, num_actions)
    # bf16 MXU operands + f32 accumulation + bf16 output store -> loosened
    # tolerance vs the f32 reference.
    assert jnp.allclose(out, ref, atol=5e-3, rtol=2e-2), "mismatch vs JAX reference"

    print("KERNEL_OK")
</pallas_src>

<mosaic_0001>
module attributes {stable_mosaic.version = 11 : i64} {
  func.func @policy_kernel(%arg0: i32, %arg1: memref<16x16xf32, #tpu.memory_space<vmem>>, %arg2: memref<16x128xbf16, #tpu.memory_space<vmem>>, %arg3: memref<1x128xf32, #tpu.memory_space<vmem>>, %arg4: memref<128x128xbf16, #tpu.memory_space<vmem>>, %arg5: memref<1x128xf32, #tpu.memory_space<vmem>>, %arg6: memref<128x128xbf16, #tpu.memory_space<vmem>>, %arg7: memref<1x128xf32, #tpu.memory_space<vmem>>, %arg8: memref<16x128xbf16, #tpu.memory_space<vmem>>) attributes {dimension_semantics = [#tpu.dimension_semantics<parallel>], iteration_bounds = array<i64: 1>, scalar_prefetch = 0 : i64, scratch_operands = 0 : i64, tpu.core_type = #tpu.core_type<tc>, window_params = [{transform_indices = @transform_0, window_bounds = array<i64: 16, 16>}, {pipeline_mode = #tpu.pipeline_mode<synchronous>, transform_indices = @transform_1, window_bounds = array<i64: 16, 128>}, {pipeline_mode = #tpu.pipeline_mode<synchronous>, transform_indices = @transform_2, window_bounds = array<i64: 1, 128>}, {pipeline_mode = #tpu.pipeline_mode<synchronous>, transform_indices = @transform_3, window_bounds = array<i64: 128, 128>}, {pipeline_mode = #tpu.pipeline_mode<synchronous>, transform_indices = @transform_4, window_bounds = array<i64: 1, 128>}, {pipeline_mode = #tpu.pipeline_mode<synchronous>, transform_indices = @transform_5, window_bounds = array<i64: 128, 128>}, {pipeline_mode = #tpu.pipeline_mode<synchronous>, transform_indices = @transform_6, window_bounds = array<i64: 1, 128>}, {transform_indices = @transform_7, window_bounds = array<i64: 16, 128>}]} {
    %c0 = arith.constant 0 : index
    %c0_0 = arith.constant 0 : index
    %0 = vector.load %arg1[%c0, %c0_0] : memref<16x16xf32, #tpu.memory_space<vmem>>, vector<16x16xf32>
    %1 = arith.truncf %0 : vector<16x16xf32> to vector<16x16xbf16>
    %c0_1 = arith.constant 0 : index
    %c0_2 = arith.constant 0 : index
    %2 = vector.load %arg2[%c0_1, %c0_2] : memref<16x128xbf16, #tpu.memory_space<vmem>>, vector<16x128xbf16>
    %cst = arith.constant dense<0.000000e+00> : vector<16x128xf32>
    %3 = tpu.matmul %1, %2, %cst {dimension_numbers = #tpu.dot_dimension_numbers<[1], [0], [0], [1], [0, 0, 1, 1], [], []>} : vector<16x16xbf16>, vector<16x128xbf16>, vector<16x128xf32> -> vector<16x128xf32>
    %c0_3 = arith.constant 0 : index
    %c0_4 = arith.constant 0 : index
    %4 = vector.load %arg3[%c0_3, %c0_4] : memref<1x128xf32, #tpu.memory_space<vmem>>, vector<1x128xf32>
    %5 = vector.broadcast %4 : vector<1x128xf32> to vector<16x128xf32>
    %6 = arith.addf %3, %5 : vector<16x128xf32>
    %cst_5 = arith.constant 0.000000e+00 : f32
    %7 = vector.broadcast %cst_5 : f32 to vector<16x128xf32>
    %8 = arith.maximumf %6, %7 : vector<16x128xf32>
    %9 = arith.truncf %8 : vector<16x128xf32> to vector<16x128xbf16>
    %c0_6 = arith.constant 0 : index
    %c0_7 = arith.constant 0 : index
    %10 = vector.load %arg4[%c0_6, %c0_7] : memref<128x128xbf16, #tpu.memory_space<vmem>>, vector<128x128xbf16>
    %cst_8 = arith.constant dense<0.000000e+00> : vector<16x128xf32>
    %11 = tpu.matmul %9, %10, %cst_8 {dimension_numbers = #tpu.dot_dimension_numbers<[1], [0], [0], [1], [0, 0, 1, 1], [], []>} : vector<16x128xbf16>, vector<128x128xbf16>, vector<16x128xf32> -> vector<16x128xf32>
    %c0_9 = arith.constant 0 : index
    %c0_10 = arith.constant 0 : index
    %12 = vector.load %arg5[%c0_9, %c0_10] : memref<1x128xf32, #tpu.memory_space<vmem>>, vector<1x128xf32>
    %13 = vector.broadcast %12 : vector<1x128xf32> to vector<16x128xf32>
    %14 = arith.addf %11, %13 : vector<16x128xf32>
    %cst_11 = arith.constant 0.000000e+00 : f32
    %15 = vector.broadcast %cst_11 : f32 to vector<16x128xf32>
    %16 = arith.maximumf %14, %15 : vector<16x128xf32>
    %17 = arith.truncf %16 : vector<16x128xf32> to vector<16x128xbf16>
    %c0_12 = arith.constant 0 : index
    %c0_13 = arith.constant 0 : index
    %18 = vector.load %arg6[%c0_12, %c0_13] : memref<128x128xbf16, #tpu.memory_space<vmem>>, vector<128x128xbf16>
    %cst_14 = arith.constant dense<0.000000e+00> : vector<16x128xf32>
    %19 = tpu.matmul %17, %18, %cst_14 {dimension_numbers = #tpu.dot_dimension_numbers<[1], [0], [0], [1], [0, 0, 1, 1], [], []>} : vector<16x128xbf16>, vector<128x128xbf16>, vector<16x128xf32> -> vector<16x128xf32>
    %c0_15 = arith.constant 0 : index
    %c0_16 = arith.constant 0 : index
    %20 = vector.load %arg7[%c0_15, %c0_16] : memref<1x128xf32, #tpu.memory_space<vmem>>, vector<1x128xf32>
    %21 = vector.broadcast %20 : vector<1x128xf32> to vector<16x128xf32>
    %22 = arith.addf %19, %21 : vector<16x128xf32>
    %23 = math.tanh %22 : vector<16x128xf32>
    %24 = arith.truncf %23 : vector<16x128xf32> to vector<16x128xbf16>
    %c0_17 = arith.constant 0 : index
    %c0_18 = arith.constant 0 : index
    %25 = vector.load %arg8[%c0_17, %c0_18] : memref<16x128xbf16, #tpu.memory_space<vmem>>, vector<16x128xbf16>
    tpu.vector_store %arg8[%c0_17, %c0_18], %24 {strides = array<i32>} : memref<16x128xbf16, #tpu.memory_space<vmem>>, vector<16x128xbf16>,
    return
  }
  func.func @transform_0(%arg0: i32) -> (i32, i32) {
    %c0_i32 = arith.constant 0 : i32
    %c0_i32_0 = arith.constant 0 : i32
    return %arg0, %c0_i32 : i32, i32
  }
  func.func @transform_1(%arg0: i32) -> (i32, i32) {
    %c0_i32 = arith.constant 0 : i32
    %c0_i32_0 = arith.constant 0 : i32
    %c0_i32_1 = arith.constant 0 : i32
    return %c0_i32, %c0_i32_0 : i32, i32
  }
  func.func @transform_2(%arg0: i32) -> (i32, i32) {
    %c0_i32 = arith.constant 0 : i32
    %c0_i32_0 = arith.constant 0 : i32
    %c0_i32_1 = arith.constant 0 : i32
    return %c0_i32, %c0_i32_0 : i32, i32
  }
  func.func @transform_3(%arg0: i32) -> (i32, i32) {
    %c0_i32 = arith.constant 0 : i32
    %c0_i32_0 = arith.constant 0 : i32
    %c0_i32_1 = arith.constant 0 : i32
    return %c0_i32, %c0_i32_0 : i32, i32
  }
  func.func @transform_4(%arg0: i32) -> (i32, i32) {
    %c0_i32 = arith.constant 0 : i32
    %c0_i32_0 = arith.constant 0 : i32
    %c0_i32_1 = arith.constant 0 : i32
    return %c0_i32, %c0_i32_0 : i32, i32
  }
  func.func @transform_5(%arg0: i32) -> (i32, i32) {
    %c0_i32 = arith.constant 0 : i32
    %c0_i32_0 = arith.constant 0 : i32
    %c0_i32_1 = arith.constant 0 : i32
    return %c0_i32, %c0_i32_0 : i32, i32
  }
  func.func @transform_6(%arg0: i32) -> (i32, i32) {
    %c0_i32 = arith.constant 0 : i32
    %c0_i32_0 = arith.constant 0 : i32
    %c0_i32_1 = arith.constant 0 : i32
    return %c0_i32, %c0_i32_0 : i32, i32
  }
  func.func @transform_7(%arg0: i32) -> (i32, i32) {
    %c0_i32 = arith.constant 0 : i32
    %c0_i32_0 = arith.constant 0 : i32
    return %arg0, %c0_i32 : i32, i32
  }
}

</mosaic_0001>

<llo_original>
// kernel: policy_forward.1
$region0: #{policy_forward.1}
  #allocation0 [shape = 'u32[]', space=smem, size = 0x4, offset = 0x4, fixed_abs, tag = 'smem constant byte address 0x4 - core index']
  #allocation1 [shape = 'u32[72,128]{1,0:T(1,128)}', space=vmem, size = 0x9000, scoped, tag = 'internal scratch']
  %s0 = inlined_call_operand.vmem [shape: f32[16,16], index: 0, kind: input, shape index: {}]
  %s1 = inlined_call_operand.vmem [shape: bf16[16,128], index: 1, kind: input, shape index: {}]
  %s2 = inlined_call_operand.vmem [shape: f32[1,128], index: 2, kind: input, shape index: {}]
  %s3 = inlined_call_operand.hbm [shape: bf16[128,128], index: 3, kind: input, shape index: {}]
  %s4 = inlined_call_operand.vmem [shape: f32[1,128], index: 4, kind: input, shape index: {}]
  %s5 = inlined_call_operand.hbm [shape: bf16[128,128], index: 5, kind: input, shape index: {}]
  %s6 = inlined_call_operand.vmem [shape: f32[1,128], index: 6, kind: input, shape index: {}]
  %s7 = inlined_call_operand.vmem [shape: bf16[16,128], index: 7, kind: output, shape index: {}]
  %s8 = sld [smem:[#allocation0]]
  $region46: #{policy_forward.1} parent=0
    _
  %s10 = ssub.s32 1, %s8
  %s11 = scalar_select 0, %s10, %s8
  $region1: #{policy_forward.1} parent=0
    #allocation2 [shape = 'u8[32768]{0}', space=vmem, size = 0x8000, scoped, tag = 'input window, operand 3, single buffered']
    #allocation3 [shape = 's32[1]{0}', space=sflag, size = 0x4, scoped, tag = 'scoped memory for policy_forward.1']
    #allocation4 [shape = 'u8[32768]{0}', space=vmem, size = 0x8000, scoped, tag = 'input window, operand 5, single buffered']
    #allocation5 [shape = 's32[1]{0}', space=sflag, size = 0x4, scoped, tag = 'scoped memory for policy_forward.1']
    %12 = vsyncpa [#allocation3], 0
    %13 = vsyncpa [#allocation5], 0
    // Predicated region
    $region2: #{policy_forward.1} parent=1 // pred_check
      _
    $region3: #{policy_forward.1} parent=1 // pred_check_branch
      %15 = sbr.rel (0) target = $region5
    $region4: #{policy_forward.1} parent=1 // pred_region
      _
    $region5: #{policy_forward.1} parent=1 // pred_fallthru
      _
    // Predicated region
    $region6: #{policy_forward.1} parent=1 // pred_check
      _
    $region7: #{policy_forward.1} parent=1 // pred_check_branch
      %17 = sbr.rel (0) target = $region9
    $region8: #{policy_forward.1} parent=1 // pred_region
      _
    $region9: #{policy_forward.1} parent=1 // pred_fallthru
      _
    // Predicated region
    $region10: #{policy_forward.1} parent=1 // pred_check
      _
    $region11: #{policy_forward.1} parent=1 // pred_check_branch
      %19 = sbr.rel (0) target = $region13
    $region12: #{policy_forward.1} parent=1 // pred_region
      _
    $region13: #{policy_forward.1} parent=1 // pred_fallthru
      _
    // Predicated region
    $region14: #{policy_forward.1} parent=1 // pred_check
      _
    $region15: #{policy_forward.1} parent=1 // pred_check_branch
      %21 = sbr.rel (0) target = $region17
    $region16: #{policy_forward.1} parent=1 // pred_region
      %23 = vsyncadd [#allocation3], 0
      %s24 = sshll.u32 %s3, 4
      %s25 = int_to_ptr.hbm [resolvable:$true] %s24
      %s26 = sshll.u32 [#allocation2], 4
      %s27 = int_to_ptr.vmem [resolvable:$true] %s26
      %32 = dma.hbm_to_vmem [thread:$0]  %s25, 1024, %s27, [#allocation3], 64, 64, 4
    $region17: #{policy_forward.1} parent=1 // pred_fallthru
      _
    // Predicated region
    $region18: #{policy_forward.1} parent=1 // pred_check
      _
    $region19: #{policy_forward.1} parent=1 // pred_check_branch
      %34 = sbr.rel (0) target = $region21
    $region20: #{policy_forward.1} parent=1 // pred_region
      _
    $region21: #{policy_forward.1} parent=1 // pred_fallthru
      _
    // Predicated region
    $region22: #{policy_forward.1} parent=1 // pred_check
      _
    $region23: #{policy_forward.1} parent=1 // pred_check_branch
      %36 = sbr.rel (0) target = $region25
    $region24: #{policy_forward.1} parent=1 // pred_region
      %38 = vsyncadd [#allocation5], 0
      %s39 = sshll.u32 %s5, 4
      %s40 = int_to_ptr.hbm [resolvable:$true] %s39
      %s41 = sshll.u32 [#allocation4], 4
      %s42 = int_to_ptr.vmem [resolvable:$true] %s41
      %47 = dma.hbm_to_vmem [thread:$0]  %s40, 1024, %s42, [#allocation5], 64, 64, 4
    $region25: #{policy_forward.1} parent=1 // pred_fallthru
      _
    // Predicated region
    $region26: #{policy_forward.1} parent=1 // pred_check
      _
    $region27: #{policy_forward.1} parent=1 // pred_check_branch
      %49 = sbr.rel (0) target = $region29
    $region28: #{policy_forward.1} parent=1 // pred_region
      _
    $region29: #{policy_forward.1} parent=1 // pred_fallthru
      _
    // Predicated region
    $region30: #{policy_forward.1} parent=1 // pred_check
      _
    $region31: #{policy_forward.1} parent=1 // pred_check_branch
      %51 = sbr.rel (0) target = $region33
    $region32: #{policy_forward.1} parent=1 // pred_region
      %53 = dma.done [#allocation3], 1024
    $region33: #{policy_forward.1} parent=1 // pred_fallthru
      _
    // Predicated region
    $region34: #{policy_forward.1} parent=1 // pred_check
      _
    $region35: #{policy_forward.1} parent=1 // pred_check_branch
      %55 = sbr.rel (0) target = $region37
    $region36: #{policy_forward.1} parent=1 // pred_region
      %57 = dma.done [#allocation5], 1024
    $region37: #{policy_forward.1} parent=1 // pred_fallthru
      _
    %v59 = vld [vmem:[%s0] sm:$0xff]
    %v60 = vld [vmem:[%s0 + $0x8] sm:$0xff]
    %v61 = vpack.c.bf16 %v60, %v59
    %v62 = vld [vmem:[%s1] sm:$0xf]
    %v63 = vld [vmem:[%s1 + $0x4] sm:$0xf]
    %v64 = vld [vmem:[%s2] sm:$0x1]
    %v66 = vperm.slane %v64, 0
    %v70 = vunpack.c.l.b16 %v62
    %v71 = vunpack.c.l.b16 %v63
    %v72 = vpack.c.b16 %v71, %v70
    %vm74 = vcmask 130048
    %v76 = vsel %vm74, %v61, 0
    %78 = vmatpush.bf16.msra.mxu0 0
    %79 = vmatpush.bf16.msra.mxu0 0
    %80 = vmatpush.bf16.msra.mxu0 0
    %81 = vmatpush.bf16.msra.mxu0 0
    %82 = vmatpush.bf16.msra.mxu0 0
    %83 = vmatpush.bf16.msra.mxu0 0
    %84 = vmatpush.bf16.msra.mxu0 0
    %85 = vmatpush.bf16.msra.mxu0 %v72
    %86 = vmatmul.bf16.gmra.mxu0 %v76
    %v87 = vpop.f32.mrf.mxu0
    %v88 = vadd.f32 %v66, %v87
    %v89 = vpop.f32.mrf.mxu0
    %v90 = vadd.f32 %v66, %v89
    %91 = vdwg.mxu0
    %v92 = vmax.f32 %v88, 0.0
    %v93 = vmax.f32 %v90, 0.0
    %v94 = vpack.c.bf16 %v93, %v92
    %v95 = vld [vmem:[#allocation2] sm:$0xf]
    %v96 = vld [vmem:[#allocation2 + $0x4] sm:$0xf]
    %v97 = vld [vmem:[#allocation2 + $0x8] sm:$0xf]
    %v98 = vld [vmem:[#allocation2 + $0xc] sm:$0xf]
    %v99 = vld [vmem:[#allocation2 + $0x10] sm:$0xf]
    %v100 = vld [vmem:[#allocation2 + $0x14] sm:$0xf]
    %v101 = vld [vmem:[#allocation2 + $0x18] sm:$0xf]
    %v102 = vld [vmem:[#allocation2 + $0x1c] sm:$0xf]
    %v103 = vld [vmem:[#allocation2 + $0x20] sm:$0xf]
    %v104 = vld [vmem:[#allocation2 + $0x24] sm:$0xf]
    %v105 = vld [vmem:[#allocation2 + $0x28] sm:$0xf]
    %v106 = vld [vmem:[#allocation2 + $0x2c] sm:$0xf]
    %v107 = vld [vmem:[#allocation2 + $0x30] sm:$0xf]
    %v108 = vld [vmem:[#allocation2 + $0x34] sm:$0xf]
    %v109 = vld [vmem:[#allocation2 + $0x38] sm:$0xf]
    %v110 = vld [vmem:[#allocation2 + $0x3c] sm:$0xf]
    %v111 = vld [vmem:[%s4] sm:$0x1]
    %v113 = vperm.slane %v111, 0
    %v131 = vunpack.c.l.b16 %v95
    %v132 = vunpack.c.l.b16 %v96
    %v133 = vunpack.c.l.b16 %v97
    %v134 = vunpack.c.l.b16 %v98
    %v135 = vunpack.c.l.b16 %v99
    %v136 = vunpack.c.l.b16 %v100
    %v137 = vunpack.c.l.b16 %v101
    %v138 = vunpack.c.l.b16 %v102
    %v139 = vunpack.c.l.b16 %v103
    %v140 = vunpack.c.l.b16 %v104
    %v141 = vunpack.c.l.b16 %v105
    %v142 = vunpack.c.l.b16 %v106
    %v143 = vunpack.c.l.b16 %v107
    %v144 = vunpack.c.l.b16 %v108
    %v145 = vunpack.c.l.b16 %v109
    %v146 = vunpack.c.l.b16 %v110
    %v147 = vpack.c.b16 %v132, %v131
    %v148 = vpack.c.b16 %v134, %v133
    %v149 = vpack.c.b16 %v136, %v135
    %v150 = vpack.c.b16 %v138, %v137
    %v151 = vpack.c.b16 %v140, %v139
    %v152 = vpack.c.b16 %v142, %v141
    %v153 = vpack.c.b16 %v144, %v143
    %v154 = vpack.c.b16 %v146, %v145
    %163 = vmatpush.bf16.msra.mxu0 %v154
    %164 = vmatpush.bf16.msra.mxu0 %v153
    %165 = vmatpush.bf16.msra.mxu0 %v152
    %166 = vmatpush.bf16.msra.mxu0 %v151
    %167 = vmatpush.bf16.msra.mxu0 %v150
    %168 = vmatpush.bf16.msra.mxu0 %v149
    %169 = vmatpush.bf16.msra.mxu0 %v148
    %170 = vmatpush.bf16.msra.mxu0 %v147
    %171 = vmatmul.bf16.gmra.mxu0 %v94
    %v172 = vpop.f32.mrf.mxu0
    %v173 = vadd.f32 %v113, %v172
    %v174 = vpop.f32.mrf.mxu0
    %v175 = vadd.f32 %v113, %v174
    %176 = vdwg.mxu0
    %v177 = vmax.f32 %v173, 0.0
    %v178 = vmax.f32 %v175, 0.0
    %v179 = vpack.c.bf16 %v178, %v177
    %v180 = vld [vmem:[#allocation4] sm:$0xf]
    %v181 = vld [vmem:[#allocation4 + $0x4] sm:$0xf]
    %v182 = vld [vmem:[#allocation4 + $0x8] sm:$0xf]
    %v183 = vld [vmem:[#allocation4 + $0xc] sm:$0xf]
    %v184 = vld [vmem:[#allocation4 + $0x10] sm:$0xf]
    %v185 = vld [vmem:[#allocation4 + $0x14] sm:$0xf]
    %v186 = vld [vmem:[#allocation4 + $0x18] sm:$0xf]
    %v187 = vld [vmem:[#allocation4 + $0x1c] sm:$0xf]
    %v188 = vld [vmem:[#allocation4 + $0x20] sm:$0xf]
    %v189 = vld [vmem:[#allocation4 + $0x24] sm:$0xf]
    %v190 = vld [vmem:[#allocation4 + $0x28] sm:$0xf]
    %v191 = vld [vmem:[#allocation4 + $0x2c] sm:$0xf]
    %v192 = vld [vmem:[#allocation4 + $0x30] sm:$0xf]
    %v193 = vld [vmem:[#allocation4 + $0x34] sm:$0xf]
    %v194 = vld [vmem:[#allocation4 + $0x38] sm:$0xf]
    %v195 = vld [vmem:[#allocation4 + $0x3c] sm:$0xf]
    %v196 = vld [vmem:[%s6] sm:$0x1]
    %v198 = vperm.slane %v196, 0
    %v216 = vunpack.c.l.b16 %v180
    %v217 = vunpack.c.l.b16 %v181
    %v218 = vunpack.c.l.b16 %v182
    %v219 = vunpack.c.l.b16 %v183
    %v220 = vunpack.c.l.b16 %v184
    %v221 = vunpack.c.l.b16 %v185
    %v222 = vunpack.c.l.b16 %v186
    %v223 = vunpack.c.l.b16 %v187
    %v224 = vunpack.c.l.b16 %v188
    %v225 = vunpack.c.l.b16 %v189
    %v226 = vunpack.c.l.b16 %v190
    %v227 = vunpack.c.l.b16 %v191
    %v228 = vunpack.c.l.b16 %v192
    %v229 = vunpack.c.l.b16 %v193
    %v230 = vunpack.c.l.b16 %v194
    %v231 = vunpack.c.l.b16 %v195
    %v232 = vpack.c.b16 %v217, %v216
    %v233 = vpack.c.b16 %v219, %v218
    %v234 = vpack.c.b16 %v221, %v220
    %v235 = vpack.c.b16 %v223, %v222
    %v236 = vpack.c.b16 %v225, %v224
    %v237 = vpack.c.b16 %v227, %v226
    %v238 = vpack.c.b16 %v229, %v228
    %v239 = vpack.c.b16 %v231, %v230
    %248 = vmatpush.bf16.msra.mxu0 %v239
    %249 = vmatpush.bf16.msra.mxu0 %v238
    %250 = vmatpush.bf16.msra.mxu0 %v237
    %251 = vmatpush.bf16.msra.mxu0 %v236
    %252 = vmatpush.bf16.msra.mxu0 %v235
    %253 = vmatpush.bf16.msra.mxu0 %v234
    %254 = vmatpush.bf16.msra.mxu0 %v233
    %255 = vmatpush.bf16.msra.mxu0 %v232
    %256 = vmatmul.bf16.gmra.mxu0 %v179
    %v257 = vpop.f32.mrf.mxu0
    %v258 = vadd.f32 %v198, %v257
    %v259 = vpop.f32.mrf.mxu0
    %v260 = vadd.f32 %v198, %v259
    %261 = vdwg.mxu0
    %v262 = vtanh.pop %v258
    %v263 = vtanh.pop %v260
    %v264 = vpack.c.bf16 %v262, %v262
    %v265 = vpack.c.bf16 %v263, %v263
    %266 = vst [vmem:[%s7] sm:$0xf] %v264
    %267 = vst [vmem:[%s7 + $0x4] sm:$0xf] %v265
    // Predicated region
    $region38: #{policy_forward.1} parent=1 // pred_check
      _
    $region39: #{policy_forward.1} parent=1 // pred_check_branch
      %269 = sbr.rel (0) target = $region41
    $region40: #{policy_forward.1} parent=1 // pred_region
      _
    $region41: #{policy_forward.1} parent=1 // pred_fallthru
      _
    // Predicated region
    $region42: #{policy_forward.1} parent=1 // pred_check
      _
    $region43: #{policy_forward.1} parent=1 // pred_check_branch
      %271 = sbr.rel (0) target = $region45
    $region44: #{policy_forward.1} parent=1 // pred_region
      _
    $region45: #{policy_forward.1} parent=1 // pred_fallthru
      _
    %272 = vsyncpa [#allocation3], 1
    %273 = vsyncpa [#allocation5], 1

</llo_original>
